<compile_context>
chip_gen: v5e
topology: v5e:2x2
jax: 0.10.0
libtpu: 0.0.40
codegen_flags: <defaults>
</compile_context>

<pallas_src>
import jax
import jax.numpy as jnp
from jax.experimental import pallas as pl
from jax.experimental.pallas import tpu as pltpu

IMAGE_SIZE = 12
IN_DIM = IMAGE_SIZE * IMAGE_SIZE  # 144
H1 = 32
H2 = 16
OUT_DIM = 1

# bf16 x block at 4096 rows = 4096 * 256(lane-padded) * 2 B = 2 MB per buffer,
# 4 MB double-buffered -> safe under every chip's scoped-VMEM default.
DEFAULT_TILE_B = 4096


def _discriminator_kernel(x_ref, w1_ref, b1_ref, w2_ref, b2_ref, w3_ref, b3_ref, o_ref):
    # Layer 1: Linear(144 -> 32) + ReLU.  bf16 inputs, f32 MXU accumulation.
    h1 = jnp.dot(x_ref[...], w1_ref[...], preferred_element_type=jnp.float32) + b1_ref[...]
    h1 = jnp.maximum(h1, 0.0)
    # Layer 2: Linear(32 -> 16) + ReLU (f32 on the MXU; negligible traffic).
    h2 = jnp.dot(h1, w2_ref[...], preferred_element_type=jnp.float32) + b2_ref[...]
    h2 = jnp.maximum(h2, 0.0)
    # Layer 3: Linear(16 -> 1) + Sigmoid, emitted lane-dense.
    # Contract w3 (1, 16) against h2 (TILE_B, 16) over the hidden dim, giving
    # logits of shape (1, TILE_B): batch lands on the lane axis so the store
    # below is a full-width (unmasked) vst instead of a 1-lane masked one.
    logits = jax.lax.dot_general(
        w3_ref[...], h2,
        dimension_numbers=(((1,), (1,)), ((), ())),
        preferred_element_type=jnp.float32,
    ) + b3_ref[...]                       # (1, TILE_B)
    o_ref[...] = jax.nn.sigmoid(logits)   # sigmoid exp rides the EUP slot


def _pick_tile(batch, requested):
    """Batch tile: whole batch if small; otherwise a multiple of 128, capped so
    the grid has >= ~4 steps (gives the double-buffer something to hide behind)
    and capped at `requested` (default 4096, VMEM-safe on v5e/v6e/v7x)."""
    if batch <= 128:
        return batch
    req = max(128, (requested // 128) * 128)
    depth_cap = max(128, (pl.cdiv(batch, 4) // 128) * 128)
    return min(req, depth_cap)


def discriminator_forward(x, params, *, tile_b=DEFAULT_TILE_B, column_output=True):
    """x: (B, 144) float -> (B, 1) float32 in [0, 1] (or (1, B) if column_output=False)."""
    w1, b1, w2, b2, w3, b3 = params
    B = x.shape[0]

    # Cast the HBM-bound operands to bf16 once; accumulation stays f32 in-kernel.
    x_bf16 = x.astype(jnp.bfloat16)
    w1_bf16 = w1.astype(jnp.bfloat16)

    tile = _pick_tile(B, tile_b)
    grid = (pl.cdiv(B, tile),)

    # Batch-tiled x; all params use constant index_maps (fetched once, resident).
    x_spec = pl.BlockSpec((tile, IN_DIM), lambda i: (i, 0))
    w1_spec = pl.BlockSpec((IN_DIM, H1), lambda i: (0, 0))
    b1_spec = pl.BlockSpec((1, H1), lambda i: (0, 0))
    w2_spec = pl.BlockSpec((H1, H2), lambda i: (0, 0))
    b2_spec = pl.BlockSpec((1, H2), lambda i: (0, 0))
    w3_spec = pl.BlockSpec((1, H2), lambda i: (0, 0))
    b3_spec = pl.BlockSpec((1, 1), lambda i: (0, 0))
    # Lane-dense output: (1, B) row, block (1, tile).
    out_spec = pl.BlockSpec((1, tile), lambda i: (0, i))

    param_bytes = (2 * IN_DIM * H1                       # w1 in bf16
                   + 4 * (H1 + H1 * H2 + H2 + H2 * OUT_DIM + OUT_DIM))
    cost = pl.CostEstimate(
        flops=2 * B * (IN_DIM * H1 + H1 * H2 + H2 * OUT_DIM),
        transcendentals=B * OUT_DIM,
        bytes_accessed=2 * B * IN_DIM + 4 * B * OUT_DIM + param_bytes,
    )

    out_1B = pl.pallas_call(
        _discriminator_kernel,
        out_shape=jax.ShapeDtypeStruct((1, B), jnp.float32),
        grid=grid,
        in_specs=[x_spec, w1_spec, b1_spec, w2_spec, b2_spec, w3_spec, b3_spec],
        out_specs=out_spec,
        compiler_params=pltpu.CompilerParams(
            dimension_semantics=("parallel",),   # v7x: shard batch tiles over both TCs
        ),
        cost_estimate=cost,
    )(x_bf16, w1_bf16, b1, w2, b2, w3, b3)

    if not column_output:
        # Lane-dense row layout end-to-end; lets the consumer (e.g. BCE loss)
        # skip the (1,B)->(B,1) relayout copy entirely.
        return out_1B
    # (1, B) -> (B, 1) to preserve the PyTorch module's output shape.
    return out_1B.reshape(B, OUT_DIM)


def init_params(key):
    """Deterministic init matching PyTorch nn.Linear default: U(-1/sqrt(fan_in), +).
    w1, w2 stored as (in, out); w3 stored in PyTorch layout (1, 16); b3 is (1, 1)."""
    def linear_init(k, fan_in, fan_out, *, torch_layout=False):
        kw, kb = jax.random.split(k)
        bound = 1.0 / jnp.sqrt(jnp.float32(fan_in))
        wshape = (fan_out, fan_in) if torch_layout else (fan_in, fan_out)
        w = jax.random.uniform(kw, wshape, jnp.float32, -bound, bound)
        b = jax.random.uniform(kb, (1, fan_out), jnp.float32, -bound, bound)
        return w, b

    k1, k2, k3 = jax.random.split(key, 3)
    w1, b1 = linear_init(k1, IN_DIM, H1)
    w2, b2 = linear_init(k2, H1, H2)
    w3, b3 = linear_init(k3, H2, OUT_DIM, torch_layout=True)  # (1, 16), b3 (1, 1)
    return w1, b1, w2, b2, w3, b3


def reference_forward_f32(x, params):
    """Pure-f32 reference (the literal PyTorch semantics)."""
    w1, b1, w2, b2, w3, b3 = params
    h1 = jnp.maximum(x @ w1 + b1, 0.0)
    h2 = jnp.maximum(h1 @ w2 + b2, 0.0)
    return jax.nn.sigmoid(h2 @ w3.T + b3)


def reference_forward_bf16_layer1(x, params):
    """Reference with the same bf16-input / f32-accumulate layer-1 as the kernel."""
    w1, b1, w2, b2, w3, b3 = params
    h1 = jnp.dot(x.astype(jnp.bfloat16), w1.astype(jnp.bfloat16),
                 preferred_element_type=jnp.float32) + b1
    h1 = jnp.maximum(h1, 0.0)
    h2 = jnp.maximum(h1 @ w2 + b2, 0.0)
    return jax.nn.sigmoid(h2 @ w3.T + b3)


if __name__ == "__main__":
    key = jax.random.PRNGKey(0)
    kx1, kx2, kx3, kp = jax.random.split(key, 4)
    params = init_params(kp)

    def check(x, out_col):
        ref_bf16 = reference_forward_bf16_layer1(x, params)
        ref_f32 = reference_forward_f32(x, params)
        assert out_col.shape == (x.shape[0], OUT_DIM), out_col.shape
        # Tight check vs a reference that applies the same bf16 layer-1 rounding.
        assert jnp.allclose(out_col, ref_bf16, atol=1e-4, rtol=1e-4), "mismatch vs bf16-consistent ref"
        # Loose sanity check vs the pure-f32 PyTorch-equivalent reference.
        assert jnp.allclose(out_col, ref_f32, atol=3e-2, rtol=3e-2), "mismatch vs f32 ref"

    # Case 1: B=512 -> tile 128, grid of 4 (pipelined x DMA, >= 4 steps).
    B1 = 512
    x1 = jax.random.normal(kx1, (B1, IN_DIM), jnp.float32)
    out1 = jax.block_until_ready(discriminator_forward(x1, params))
    check(x1, out1)

    # Case 2: ragged batch (last tile padded; padded rows/cols are discarded).
    B2 = 200
    x2 = jax.random.normal(kx2, (B2, IN_DIM), jnp.float32)
    out2 = jax.block_until_ready(discriminator_forward(x2, params))
    check(x2, out2)

    # Case 3: small batch -> single whole-batch tile; also exercise the
    # lane-dense (1, B) output path (skips the output relayout).
    B3 = 96
    x3 = jax.random.normal(kx3, (B3, IN_DIM), jnp.float32)
    out3_row = jax.block_until_ready(
        discriminator_forward(x3, params, column_output=False))
    assert out3_row.shape == (1, B3), out3_row.shape
    check(x3, out3_row.reshape(B3, OUT_DIM))

    print("KERNEL_OK")
</pallas_src>

<mosaic_0001>
module attributes {stable_mosaic.version = 11 : i64} {
  func.func @_discriminator_kernel(%arg0: i32, %arg1: memref<128x144xbf16, #tpu.memory_space<vmem>>, %arg2: memref<144x32xbf16, #tpu.memory_space<vmem>>, %arg3: memref<1x32xf32, #tpu.memory_space<vmem>>, %arg4: memref<32x16xf32, #tpu.memory_space<vmem>>, %arg5: memref<1x16xf32, #tpu.memory_space<vmem>>, %arg6: memref<1x16xf32, #tpu.memory_space<vmem>>, %arg7: memref<1x1xf32, #tpu.memory_space<vmem>>, %arg8: memref<1x128xf32, #tpu.memory_space<vmem>>) attributes {dimension_semantics = [#tpu.dimension_semantics<parallel>], iteration_bounds = array<i64: 4>, scalar_prefetch = 0 : i64, scratch_operands = 0 : i64, tpu.core_type = #tpu.core_type<tc>, window_params = [{transform_indices = @transform_0, window_bounds = array<i64: 128, 144>}, {pipeline_mode = #tpu.pipeline_mode<synchronous>, transform_indices = @transform_1, window_bounds = array<i64: 144, 32>}, {pipeline_mode = #tpu.pipeline_mode<synchronous>, transform_indices = @transform_2, window_bounds = array<i64: 1, 32>}, {pipeline_mode = #tpu.pipeline_mode<synchronous>, transform_indices = @transform_3, window_bounds = array<i64: 32, 16>}, {pipeline_mode = #tpu.pipeline_mode<synchronous>, transform_indices = @transform_4, window_bounds = array<i64: 1, 16>}, {pipeline_mode = #tpu.pipeline_mode<synchronous>, transform_indices = @transform_5, window_bounds = array<i64: 1, 16>}, {pipeline_mode = #tpu.pipeline_mode<synchronous>, transform_indices = @transform_6, window_bounds = array<i64: 1, 1>}, {transform_indices = @transform_7, window_bounds = array<i64: 1, 128>}]} {
    %c0 = arith.constant 0 : index
    %c0_0 = arith.constant 0 : index
    %0 = vector.load %arg1[%c0, %c0_0] : memref<128x144xbf16, #tpu.memory_space<vmem>>, vector<128x144xbf16>
    %c0_1 = arith.constant 0 : index
    %c0_2 = arith.constant 0 : index
    %1 = vector.load %arg2[%c0_1, %c0_2] : memref<144x32xbf16, #tpu.memory_space<vmem>>, vector<144x32xbf16>
    %cst = arith.constant dense<0.000000e+00> : vector<128x32xf32>
    %2 = tpu.matmul %0, %1, %cst {dimension_numbers = #tpu.dot_dimension_numbers<[1], [0], [0], [1], [0, 0, 1, 1], [], []>} : vector<128x144xbf16>, vector<144x32xbf16>, vector<128x32xf32> -> vector<128x32xf32>
    %c0_3 = arith.constant 0 : index
    %c0_4 = arith.constant 0 : index
    %3 = vector.load %arg3[%c0_3, %c0_4] : memref<1x32xf32, #tpu.memory_space<vmem>>, vector<1x32xf32>
    %4 = vector.broadcast %3 : vector<1x32xf32> to vector<128x32xf32>
    %5 = arith.addf %2, %4 : vector<128x32xf32>
    %cst_5 = arith.constant 0.000000e+00 : f32
    %6 = vector.broadcast %cst_5 : f32 to vector<128x32xf32>
    %7 = arith.maximumf %5, %6 : vector<128x32xf32>
    %c0_6 = arith.constant 0 : index
    %c0_7 = arith.constant 0 : index
    %8 = vector.load %arg4[%c0_6, %c0_7] : memref<32x16xf32, #tpu.memory_space<vmem>>, vector<32x16xf32>
    %cst_8 = arith.constant dense<0.000000e+00> : vector<128x16xf32>
    %9 = tpu.matmul %7, %8, %cst_8 {dimension_numbers = #tpu.dot_dimension_numbers<[1], [0], [0], [1], [0, 0, 1, 1], [], []>} : vector<128x32xf32>, vector<32x16xf32>, vector<128x16xf32> -> vector<128x16xf32>
    %c0_9 = arith.constant 0 : index
    %c0_10 = arith.constant 0 : index
    %10 = vector.load %arg5[%c0_9, %c0_10] : memref<1x16xf32, #tpu.memory_space<vmem>>, vector<1x16xf32>
    %11 = vector.broadcast %10 : vector<1x16xf32> to vector<128x16xf32>
    %12 = arith.addf %9, %11 : vector<128x16xf32>
    %cst_11 = arith.constant 0.000000e+00 : f32
    %13 = vector.broadcast %cst_11 : f32 to vector<128x16xf32>
    %14 = arith.maximumf %12, %13 : vector<128x16xf32>
    %c0_12 = arith.constant 0 : index
    %c0_13 = arith.constant 0 : index
    %15 = vector.load %arg6[%c0_12, %c0_13] : memref<1x16xf32, #tpu.memory_space<vmem>>, vector<1x16xf32>
    %cst_14 = arith.constant dense<0.000000e+00> : vector<1x128xf32>
    %16 = tpu.matmul %15, %14, %cst_14 {dimension_numbers = #tpu.dot_dimension_numbers<[1], [1], [0], [0], [0, 0, 1, 0], [], []>} : vector<1x16xf32>, vector<128x16xf32>, vector<1x128xf32> -> vector<1x128xf32>
    %c0_15 = arith.constant 0 : index
    %c0_16 = arith.constant 0 : index
    %17 = vector.load %arg7[%c0_15, %c0_16] : memref<1x1xf32, #tpu.memory_space<vmem>>, vector<1x1xf32>
    %18 = vector.broadcast %17 : vector<1x1xf32> to vector<1x128xf32>
    %19 = arith.addf %16, %18 : vector<1x128xf32>
    %20 = arith.negf %19 : vector<1x128xf32>
    %21 = math.exp %20 : vector<1x128xf32>
    %cst_17 = arith.constant 1.000000e+00 : f32
    %22 = vector.broadcast %cst_17 : f32 to vector<1x128xf32>
    %23 = arith.addf %22, %21 : vector<1x128xf32>
    %24 = arith.divf %22, %23 : vector<1x128xf32>
    %c0_18 = arith.constant 0 : index
    %c0_19 = arith.constant 0 : index
    %25 = vector.load %arg8[%c0_18, %c0_19] : memref<1x128xf32, #tpu.memory_space<vmem>>, vector<1x128xf32>
    tpu.vector_store %arg8[%c0_18, %c0_19], %24 {strides = array<i32>} : memref<1x128xf32, #tpu.memory_space<vmem>>, vector<1x128xf32>,
    return
  }
  func.func @transform_0(%arg0: i32) -> (i32, i32) {
    %c0_i32 = arith.constant 0 : i32
    %c0_i32_0 = arith.constant 0 : i32
    return %arg0, %c0_i32 : i32, i32
  }
  func.func @transform_1(%arg0: i32) -> (i32, i32) {
    %c0_i32 = arith.constant 0 : i32
    %c0_i32_0 = arith.constant 0 : i32
    %c0_i32_1 = arith.constant 0 : i32
    return %c0_i32, %c0_i32_0 : i32, i32
  }
  func.func @transform_2(%arg0: i32) -> (i32, i32) {
    %c0_i32 = arith.constant 0 : i32
    %c0_i32_0 = arith.constant 0 : i32
    %c0_i32_1 = arith.constant 0 : i32
    return %c0_i32, %c0_i32_0 : i32, i32
  }
  func.func @transform_3(%arg0: i32) -> (i32, i32) {
    %c0_i32 = arith.constant 0 : i32
    %c0_i32_0 = arith.constant 0 : i32
    %c0_i32_1 = arith.constant 0 : i32
    return %c0_i32, %c0_i32_0 : i32, i32
  }
  func.func @transform_4(%arg0: i32) -> (i32, i32) {
    %c0_i32 = arith.constant 0 : i32
    %c0_i32_0 = arith.constant 0 : i32
    %c0_i32_1 = arith.constant 0 : i32
    return %c0_i32, %c0_i32_0 : i32, i32
  }
  func.func @transform_5(%arg0: i32) -> (i32, i32) {
    %c0_i32 = arith.constant 0 : i32
    %c0_i32_0 = arith.constant 0 : i32
    %c0_i32_1 = arith.constant 0 : i32
    return %c0_i32, %c0_i32_0 : i32, i32
  }
  func.func @transform_6(%arg0: i32) -> (i32, i32) {
    %c0_i32 = arith.constant 0 : i32
    %c0_i32_0 = arith.constant 0 : i32
    %c0_i32_1 = arith.constant 0 : i32
    return %c0_i32, %c0_i32_0 : i32, i32
  }
  func.func @transform_7(%arg0: i32) -> (i32, i32) {
    %c0_i32 = arith.constant 0 : i32
    %c0_i32_0 = arith.constant 0 : i32
    return %c0_i32, %arg0 : i32, i32
  }
}

</mosaic_0001>

<llo_original>
// kernel: tpu_custom_call.1
$region0: #{tpu_custom_call.1}
  #allocation0 [shape = 'u32[]', space=smem, size = 0x4, offset = 0x4, fixed_abs, tag = 'smem constant byte address 0x4 - core index']
  #allocation1 [shape = 'u32[72,128]{1,0:T(1,128)}', space=vmem, size = 0x9000, scoped, tag = 'internal scratch']
  #allocation2 [shape = 'f32[1,1]{1,0:T(1,128)S(1)}', space=vmem, size = 0x200, scoped, tag = 'scoped memory for tpu_custom_call.1']
  %s0 = inlined_call_operand.vmem [shape: bf16[512,144], index: 0, kind: input, shape index: {}]
  %s1 = inlined_call_operand.vmem [shape: bf16[144,32], index: 1, kind: input, shape index: {}]
  %s2 = inlined_call_operand.vmem [shape: f32[1,32], index: 2, kind: input, shape index: {}]
  %s3 = inlined_call_operand.vmem [shape: f32[32,16], index: 3, kind: input, shape index: {}]
  %s4 = inlined_call_operand.vmem [shape: f32[1,16], index: 4, kind: input, shape index: {}]
  %s5 = inlined_call_operand.vmem [shape: f32[1,16], index: 5, kind: input, shape index: {}]
  %s6 = inlined_call_operand.<no memory space> [shape: f32[1,1], index: 6, kind: input, shape index: {}]
  %s7 = inlined_call_operand.hbm [shape: f32[1,512], index: 7, kind: output, shape index: {}]
  %s8 = sld [smem:[#allocation0]]
  $region61: #{tpu_custom_call.1} parent=0
    _
  %s10 = ssub.s32 1, %s8
  %s11 = scalar_select 0, %s10, %s8
  %v12 = vstv %s6
  %13 = vst [vmem:[#allocation2] sm:$0x1] %v12
  $region1: #{tpu_custom_call.1} parent=0
    #allocation3 [shape = 'u8[1024]{0}', space=vmem, size = 0x400, scoped, tag = 'output window, operand 0']
    #allocation4 [shape = 's32[2]{0}', space=sflag, size = 0x8, scoped, tag = 'scoped memory for tpu_custom_call.1']
    %14 = vsyncpa [#allocation4], 0
    %s15 = scalar_lea.sflag [#allocation4], 1
    %16 = vsyncpa %s15, 0
    loop: start=0, step=1, limit=6
    $region2: #{tpu_custom_call.1} parent=1 // loop_pre_header
      _
    $region3: #{tpu_custom_call.1} parent=1 // loop_header
      %s18 = sphi 0, %s22
      %p19 = scmp.ge.s32.totalorder %s18, 6
      %s28 = sphi 0, %s30
      %s31 = sphi 0, %s28
      %s32 = sphi 0, %s31
      %s48 = sphi 0, %s32
      %s52 = sphi 0, %s52
      %s54 = sphi 0, %s52
      %s55 = sphi 0, %s54
      %s69 = sphi 0, %s55
      %s73 = sphi 0, %s73
      %s75 = sphi 0, %s73
      %s76 = sphi 0, %s75
      %s90 = sphi 0, %s76
      %s94 = sphi 0, %s94
      %s96 = sphi 0, %s94
      %s97 = sphi 0, %s96
      %s111 = sphi 0, %s97
      %s115 = sphi 0, %s115
      %s117 = sphi 0, %s115
      %s118 = sphi 0, %s117
      %s132 = sphi 0, %s118
      %s136 = sphi 0, %s136
      %s138 = sphi 0, %s136
      %s139 = sphi 0, %s138
      %s153 = sphi 0, %s139
      %s157 = sphi 0, %s157
      %s159 = sphi 0, %s157
      %s160 = sphi 0, %s159
      %s174 = sphi 0, %s160
      %s180 = sphi 0, %s182
      %s183 = sphi 0, %s180
      %s184 = sphi 0, %s183
      %s200 = sphi 0, %s184
    $region4: #{tpu_custom_call.1} parent=1 // loop_header_branch
      %21 = sbr.rel (%p19) target = $region8
    $region5: #{tpu_custom_call.1} parent=1 // loop_body
      %s23 = ssub.s32 %s18, 1
      %s24 = ssub.s32 %s18, 2
      %s25 = sadd.s32 %s18, 1
      %s26 = ssub.s32 %s18, %s25
      %p27 = scmp.eq.s32.totalorder %s26, 0
      %s29 = sadd.s32 %s28, 1
      %s30 = scalar_select %p27, %s28, %s29
      %p33 = pneg %p27
      %p34 = scmp.eq.s32.totalorder %s18, 3
      %p35 = por %p33, %p34
      %p36 = scmp.ne.s32.totalorder %s28, %s31
      %p37 = scmp.eq.s32.totalorder %s18, 0
      %p38 = por %p36, %p37
      %p39 = scmp.ne.s32.totalorder %s28, %s31
      %p40 = scmp.eq.s32.totalorder %s23, 3
      %p41 = por %p39, %p40
      %p42 = scmp.ne.s32.totalorder %s31, %s32
      %p43 = scmp.eq.s32.totalorder %s23, 0
      %p44 = por %p42, %p43
      %p45 = scmp.ne.s32.totalorder %s31, %s32
      %p46 = scmp.eq.s32.totalorder %s24, 3
      %p47 = por %p45, %p46
      %p49 = scmp.ne.s32.totalorder %s32, %s48
      %p50 = scmp.eq.s32.totalorder %s24, 0
      %p51 = por %p49, %p50
      %s53 = sadd.s32 %s52, 1
      %p56 = scmp.eq.s32.totalorder %s18, 3
      %p57 = scmp.ne.s32.totalorder %s52, %s54
      %p58 = scmp.eq.s32.totalorder %s18, 0
      %p59 = por %p57, %p58
      %p60 = scmp.ne.s32.totalorder %s52, %s54
      %p61 = scmp.eq.s32.totalorder %s23, 3
      %p62 = por %p60, %p61
      %p63 = scmp.ne.s32.totalorder %s54, %s55
      %p64 = scmp.eq.s32.totalorder %s23, 0
      %p65 = por %p63, %p64
      %p66 = scmp.ne.s32.totalorder %s54, %s55
      %p67 = scmp.eq.s32.totalorder %s24, 3
      %p68 = por %p66, %p67
      %p70 = scmp.ne.s32.totalorder %s55, %s69
      %p71 = scmp.eq.s32.totalorder %s24, 0
      %p72 = por %p70, %p71
      %s74 = sadd.s32 %s73, 1
      %p77 = scmp.eq.s32.totalorder %s18, 3
      %p78 = scmp.ne.s32.totalorder %s73, %s75
      %p79 = scmp.eq.s32.totalorder %s18, 0
      %p80 = por %p78, %p79
      %p81 = scmp.ne.s32.totalorder %s73, %s75
      %p82 = scmp.eq.s32.totalorder %s23, 3
      %p83 = por %p81, %p82
      %p84 = scmp.ne.s32.totalorder %s75, %s76
      %p85 = scmp.eq.s32.totalorder %s23, 0
      %p86 = por %p84, %p85
      %p87 = scmp.ne.s32.totalorder %s75, %s76
      %p88 = scmp.eq.s32.totalorder %s24, 3
      %p89 = por %p87, %p88
      %p91 = scmp.ne.s32.totalorder %s76, %s90
      %p92 = scmp.eq.s32.totalorder %s24, 0
      %p93 = por %p91, %p92
      %s95 = sadd.s32 %s94, 1
      %p98 = scmp.eq.s32.totalorder %s18, 3
      %p99 = scmp.ne.s32.totalorder %s94, %s96
      %p100 = scmp.eq.s32.totalorder %s18, 0
      %p101 = por %p99, %p100
      %p102 = scmp.ne.s32.totalorder %s94, %s96
      %p103 = scmp.eq.s32.totalorder %s23, 3
      %p104 = por %p102, %p103
      %p105 = scmp.ne.s32.totalorder %s96, %s97
      %p106 = scmp.eq.s32.totalorder %s23, 0
      %p107 = por %p105, %p106
      %p108 = scmp.ne.s32.totalorder %s96, %s97
      %p109 = scmp.eq.s32.totalorder %s24, 3
      %p110 = por %p108, %p109
      %p112 = scmp.ne.s32.totalorder %s97, %s111
      %p113 = scmp.eq.s32.totalorder %s24, 0
      %p114 = por %p112, %p113
      %s116 = sadd.s32 %s115, 1
      %p119 = scmp.eq.s32.totalorder %s18, 3
      %p120 = scmp.ne.s32.totalorder %s115, %s117
      %p121 = scmp.eq.s32.totalorder %s18, 0
      %p122 = por %p120, %p121
      %p123 = scmp.ne.s32.totalorder %s115, %s117
      %p124 = scmp.eq.s32.totalorder %s23, 3
      %p125 = por %p123, %p124
      %p126 = scmp.ne.s32.totalorder %s117, %s118
      %p127 = scmp.eq.s32.totalorder %s23, 0
      %p128 = por %p126, %p127
      %p129 = scmp.ne.s32.totalorder %s117, %s118
      %p130 = scmp.eq.s32.totalorder %s24, 3
      %p131 = por %p129, %p130
      %p133 = scmp.ne.s32.totalorder %s118, %s132
      %p134 = scmp.eq.s32.totalorder %s24, 0
      %p135 = por %p133, %p134
      %s137 = sadd.s32 %s136, 1
      %p140 = scmp.eq.s32.totalorder %s18, 3
      %p141 = scmp.ne.s32.totalorder %s136, %s138
      %p142 = scmp.eq.s32.totalorder %s18, 0
      %p143 = por %p141, %p142
      %p144 = scmp.ne.s32.totalorder %s136, %s138
      %p145 = scmp.eq.s32.totalorder %s23, 3
      %p146 = por %p144, %p145
      %p147 = scmp.ne.s32.totalorder %s138, %s139
      %p148 = scmp.eq.s32.totalorder %s23, 0
      %p149 = por %p147, %p148
      %p150 = scmp.ne.s32.totalorder %s138, %s139
      %p151 = scmp.eq.s32.totalorder %s24, 3
      %p152 = por %p150, %p151
      %p154 = scmp.ne.s32.totalorder %s139, %s153
      %p155 = scmp.eq.s32.totalorder %s24, 0
      %p156 = por %p154, %p155
      %s158 = sadd.s32 %s157, 1
      %p161 = scmp.eq.s32.totalorder %s18, 3
      %p162 = scmp.ne.s32.totalorder %s157, %s159
      %p163 = scmp.eq.s32.totalorder %s18, 0
      %p164 = por %p162, %p163
      %p165 = scmp.ne.s32.totalorder %s157, %s159
      %p166 = scmp.eq.s32.totalorder %s23, 3
      %p167 = por %p165, %p166
      %p168 = scmp.ne.s32.totalorder %s159, %s160
      %p169 = scmp.eq.s32.totalorder %s23, 0
      %p170 = por %p168, %p169
      %p171 = scmp.ne.s32.totalorder %s159, %s160
      %p172 = scmp.eq.s32.totalorder %s24, 3
      %p173 = por %p171, %p172
      %p175 = scmp.ne.s32.totalorder %s160, %s174
      %p176 = scmp.eq.s32.totalorder %s24, 0
      %p177 = por %p175, %p176
      %s178 = ssub.s32 %s18, %s25
      %p179 = scmp.eq.s32.totalorder %s178, 0
      %s181 = sadd.s32 %s180, 1
      %s182 = scalar_select %p179, %s180, %s181
      %p185 = pneg %p179
      %p186 = scmp.eq.s32.totalorder %s18, 3
      %p187 = por %p185, %p186
      %p188 = scmp.ne.s32.totalorder %s180, %s183
      %p189 = scmp.eq.s32.totalorder %s18, 0
      %p190 = por %p188, %p189
      %p191 = scmp.ne.s32.totalorder %s180, %s183
      %p192 = scmp.eq.s32.totalorder %s23, 3
      %p193 = por %p191, %p192
      %p194 = scmp.ne.s32.totalorder %s183, %s184
      %p195 = scmp.eq.s32.totalorder %s23, 0
      %p196 = por %p194, %p195
      %p197 = scmp.ne.s32.totalorder %s183, %s184
      %p198 = scmp.eq.s32.totalorder %s24, 3
      %p199 = por %p197, %p198
      %p201 = scmp.ne.s32.totalorder %s184, %s200
      %p202 = scmp.eq.s32.totalorder %s24, 0
      %p203 = por %p201, %p202
      %p204 = scmp.le.s32.totalorder 1, %s18
      %p205 = scmp.lt.s32.totalorder %s18, 5
      %p206 = pnand %p204, %p205
      %p207 = pneg %p206
      // Predicated region
      $region9: #{tpu_custom_call.1} parent=5 // pred_check
        _
      $region10: #{tpu_custom_call.1} parent=5 // pred_check_branch
        %209 = sbr.rel (%p206) target = $region12
      $region11: #{tpu_custom_call.1} parent=5 // pred_region
        %s210 = ssub.s32 %s18, 1
        // Predicated region
        $region13: #{tpu_custom_call.1} parent=11 // pred_check
          %p211 = pneg %p65
        $region14: #{tpu_custom_call.1} parent=11 // pred_check_branch
          %213 = sbr.rel (%p211) target = $region16
        $region15: #{tpu_custom_call.1} parent=11 // pred_region
          _
        $region16: #{tpu_custom_call.1} parent=11 // pred_fallthru
          _
        // Predicated region
        $region17: #{tpu_custom_call.1} parent=11 // pred_check
          %p214 = pneg %p86
        $region18: #{tpu_custom_call.1} parent=11 // pred_check_branch
          %216 = sbr.rel (%p214) target = $region20
        $region19: #{tpu_custom_call.1} parent=11 // pred_region
          _
        $region20: #{tpu_custom_call.1} parent=11 // pred_fallthru
          _
        // Predicated region
        $region21: #{tpu_custom_call.1} parent=11 // pred_check
          %p217 = pneg %p107
        $region22: #{tpu_custom_call.1} parent=11 // pred_check_branch
          %219 = sbr.rel (%p217) target = $region24
        $region23: #{tpu_custom_call.1} parent=11 // pred_region
          _
        $region24: #{tpu_custom_call.1} parent=11 // pred_fallthru
          _
        // Predicated region
        $region25: #{tpu_custom_call.1} parent=11 // pred_check
          %p220 = pneg %p128
        $region26: #{tpu_custom_call.1} parent=11 // pred_check_branch
          %222 = sbr.rel (%p220) target = $region28
        $region27: #{tpu_custom_call.1} parent=11 // pred_region
          _
        $region28: #{tpu_custom_call.1} parent=11 // pred_fallthru
          _
        // Predicated region
        $region29: #{tpu_custom_call.1} parent=11 // pred_check
          %p223 = pneg %p149
        $region30: #{tpu_custom_call.1} parent=11 // pred_check_branch
          %225 = sbr.rel (%p223) target = $region32
        $region31: #{tpu_custom_call.1} parent=11 // pred_region
          _
        $region32: #{tpu_custom_call.1} parent=11 // pred_fallthru
          _
        // Predicated region
        $region33: #{tpu_custom_call.1} parent=11 // pred_check
          %p226 = pneg %p170
        $region34: #{tpu_custom_call.1} parent=11 // pred_check_branch
          %228 = sbr.rel (%p226) target = $region36
        $region35: #{tpu_custom_call.1} parent=11 // pred_region
          _
        $region36: #{tpu_custom_call.1} parent=11 // pred_fallthru
          _
      $region12: #{tpu_custom_call.1} parent=5 // pred_fallthru
        _
      %p229 = scmp.lt.s32.totalorder %s18, 4
      // Predicated region
      $region37: #{tpu_custom_call.1} parent=5 // pred_check
        %p230 = pneg %p229
      $region38: #{tpu_custom_call.1} parent=5 // pred_check_branch
        %232 = sbr.rel (%p230) target = $region40
      $region39: #{tpu_custom_call.1} parent=5 // pred_region
        // Predicated region
        $region41: #{tpu_custom_call.1} parent=39 // pred_check
          %p233 = pneg %p38
        $region42: #{tpu_custom_call.1} parent=39 // pred_check_branch
          %235 = sbr.rel (%p233) target = $region44
        $region43: #{tpu_custom_call.1} parent=39 // pred_region
          %s236 = smul.u32 16, %s18
          %p237 = scmp.lt.s32.totalorder %s236, 63
          %s238 = scalar_select %p237, %s236, 63
          %s239 = smul.addr %s238, 2
          %s240 = smul.addr %s239, 4
          %s241 = scalar_lea.vmem %s0, %s240
          %s242 = smul.u32 16, %s18
        $region44: #{tpu_custom_call.1} parent=39 // pred_fallthru
          _
      $region40: #{tpu_custom_call.1} parent=5 // pred_fallthru
        _
      %p243 = scmp.le.s32.totalorder 1, %s18
      %p244 = scmp.lt.s32.totalorder %s18, 5
      %p245 = pnand %p243, %p244
      %p246 = pneg %p245
      // Predicated region
      $region45: #{tpu_custom_call.1} parent=5 // pred_check
        _
      $region46: #{tpu_custom_call.1} parent=5 // pred_check_branch
        %248 = sbr.rel (%p245) target = $region48
      $region47: #{tpu_custom_call.1} parent=5 // pred_region
        %s249 = ssub.s32 %s18, 1
        %s250 = smul.u32 16, %s23
        %p251 = scmp.lt.s32.totalorder %s250, 63
        %s252 = scalar_select %p251, %s250, 63
        %s253 = smul.addr %s252, 2
        %s254 = smul.addr %s253, 4
        %s255 = scalar_lea.vmem %s0, %s254
        %p256 = pneg %p44
        %p257 = pneg %p41
        %p258 = pneg %p65
        %p259 = pneg %p62
        %p260 = pneg %p86
        %p261 = pneg %p83
        %p262 = pneg %p107
        %p263 = pneg %p104
        %p264 = pneg %p128
        %p265 = pneg %p125
        %p266 = pneg %p149
        %p267 = pneg %p146
        %p268 = pneg %p170
        %p269 = pneg %p167
        %p270 = pneg %p196
        %p271 = pneg %p193
        %s272 = sand.u32 %s183, 1
        %s273 = scalar_lea.sflag [#allocation4], %s272
        %s274 = sand.u32 %s183, 1
        %s275 = scalar_lea.vmem [#allocation3], %s274
        %s276 = smul.u32 16, %s23
        %p277 = scmp.lt.s32.totalorder %s276, 63
        %s278 = scalar_select %p277, %s276, 63
        %s279 = smul.addr %s278, 2
        %s280 = smul.addr %s279, 4
        %s281 = scalar_lea.vmem %s0, %s280
        %s282 = smul.u32 16, %s23
        %v284 = vld [vmem:[%s281] sm:$0xff]
        %v285 = vld [vmem:[%s281 + $0x8] sm:$0xff]
        %v286 = vld [vmem:[%s281 + $0x10] sm:$0xff]
        %v287 = vld [vmem:[%s281 + $0x18] sm:$0xff]
        %v288 = vld [vmem:[%s281 + $0x20] sm:$0xff]
        %v289 = vld [vmem:[%s281 + $0x28] sm:$0xff]
        %v290 = vld [vmem:[%s281 + $0x30] sm:$0xff]
        %v291 = vld [vmem:[%s281 + $0x38] sm:$0xff]
        %v292 = vld [vmem:[%s281 + $0x40] sm:$0xff]
        %v293 = vld [vmem:[%s281 + $0x48] sm:$0xff]
        %v294 = vld [vmem:[%s281 + $0x50] sm:$0xff]
        %v295 = vld [vmem:[%s281 + $0x58] sm:$0xff]
        %v296 = vld [vmem:[%s281 + $0x60] sm:$0xff]
        %v297 = vld [vmem:[%s281 + $0x68] sm:$0xff]
        %v298 = vld [vmem:[%s281 + $0x70] sm:$0xff]
        %v299 = vld [vmem:[%s281 + $0x78] sm:$0xff]
        %v300 = vld [vmem:[%s1] sm:$0xf]
        %v301 = vld [vmem:[%s1 + $0x4] sm:$0xf]
        %v302 = vld [vmem:[%s1 + $0x8] sm:$0xf]
        %v303 = vld [vmem:[%s1 + $0xc] sm:$0xf]
        %v304 = vld [vmem:[%s1 + $0x10] sm:$0xf]
        %v305 = vld [vmem:[%s1 + $0x14] sm:$0xf]
        %v306 = vld [vmem:[%s1 + $0x18] sm:$0xf]
        %v307 = vld [vmem:[%s1 + $0x1c] sm:$0xf]
        %v308 = vld [vmem:[%s1 + $0x20] sm:$0xf]
        %v309 = vld [vmem:[%s1 + $0x24] sm:$0xf]
        %v310 = vld [vmem:[%s1 + $0x28] sm:$0xf]
        %v311 = vld [vmem:[%s1 + $0x2c] sm:$0xf]
        %v312 = vld [vmem:[%s1 + $0x30] sm:$0xf]
        %v313 = vld [vmem:[%s1 + $0x34] sm:$0xf]
        %v314 = vld [vmem:[%s1 + $0x38] sm:$0xf]
        %v315 = vld [vmem:[%s1 + $0x3c] sm:$0xf]
        %v316 = vld [vmem:[%s1 + $0x40] sm:$0xf]
        %v317 = vld [vmem:[%s1 + $0x44] sm:$0xf]
        %v318 = vld [vmem:[%s2] sm:$0x1]
        %v320 = vperm.slane %v318, 0
        %v338 = vunpack.c.l.b16 %v284
        %v339 = vunpack.c.h.b16 %v284
        %v340 = vunpack.c.l.b16 %v285
        %v341 = vunpack.c.h.b16 %v285
        %v342 = vunpack.c.l.b16 %v286
        %v343 = vunpack.c.h.b16 %v286
        %v344 = vunpack.c.l.b16 %v287
        %v345 = vunpack.c.h.b16 %v287
        %v346 = vunpack.c.l.b16 %v288
        %v347 = vunpack.c.h.b16 %v288
        %v348 = vunpack.c.l.b16 %v289
        %v349 = vunpack.c.h.b16 %v289
        %v350 = vunpack.c.l.b16 %v290
        %v351 = vunpack.c.h.b16 %v290
        %v352 = vunpack.c.l.b16 %v291
        %v353 = vunpack.c.h.b16 %v291
        %v354 = vunpack.c.l.b16 %v292
        %v355 = vunpack.c.h.b16 %v292
        %v356 = vunpack.c.l.b16 %v293
        %v357 = vunpack.c.h.b16 %v293
        %v358 = vunpack.c.l.b16 %v294
        %v359 = vunpack.c.h.b16 %v294
        %v360 = vunpack.c.l.b16 %v295
        %v361 = vunpack.c.h.b16 %v295
        %v362 = vunpack.c.l.b16 %v296
        %v363 = vunpack.c.h.b16 %v296
        %v364 = vunpack.c.l.b16 %v297
        %v365 = vunpack.c.h.b16 %v297
        %v366 = vunpack.c.l.b16 %v298
        %v367 = vunpack.c.h.b16 %v298
        %v368 = vunpack.c.l.b16 %v299
        %v369 = vunpack.c.h.b16 %v299
        %v370 = vpack.c.b16 %v340, %v338
        %v371 = vpack.c.b16 %v341, %v339
        %v372 = vpack.c.b16 %v344, %v342
        %v373 = vpack.c.b16 %v345, %v343
        %v374 = vpack.c.b16 %v348, %v346
        %v375 = vpack.c.b16 %v349, %v347
        %v376 = vpack.c.b16 %v352, %v350
        %v377 = vpack.c.b16 %v353, %v351
        %v378 = vpack.c.b16 %v356, %v354
        %v379 = vpack.c.b16 %v357, %v355
        %v380 = vpack.c.b16 %v360, %v358
        %v381 = vpack.c.b16 %v361, %v359
        %v382 = vpack.c.b16 %v364, %v362
        %v383 = vpack.c.b16 %v365, %v363
        %v384 = vpack.c.b16 %v368, %v366
        %v385 = vpack.c.b16 %v369, %v367
        %v412 = vunpack.c.l.b16 %v300
        %v413 = vunpack.c.l.b16 %v301
        %v414 = vunpack.c.l.b16 %v302
        %v415 = vunpack.c.l.b16 %v303
        %v416 = vunpack.c.l.b16 %v304
        %v417 = vunpack.c.l.b16 %v305
        %v418 = vunpack.c.l.b16 %v306
        %v419 = vunpack.c.l.b16 %v307
        %v420 = vunpack.c.l.b16 %v308
        %v421 = vunpack.c.l.b16 %v309
        %v422 = vunpack.c.l.b16 %v310
        %v423 = vunpack.c.l.b16 %v311
        %v424 = vunpack.c.l.b16 %v312
        %v425 = vunpack.c.l.b16 %v313
        %v426 = vunpack.c.l.b16 %v314
        %v427 = vunpack.c.l.b16 %v315
        %v428 = vunpack.c.l.b16 %v316
        %v429 = vunpack.c.l.b16 %v317
        %v430 = vpack.c.b16 %v413, %v412
        %v431 = vpack.c.b16 %v415, %v414
        %v432 = vpack.c.b16 %v417, %v416
        %v433 = vpack.c.b16 %v419, %v418
        %v434 = vpack.c.b16 %v421, %v420
        %v435 = vpack.c.b16 %v423, %v422
        %v436 = vpack.c.b16 %v425, %v424
        %v437 = vpack.c.b16 %v427, %v426
        %v438 = vpack.c.b16 %v429, %v428
        %vm448 = vcmask 130048
        %v450 = vsel %vm448, %v371, 0
        %v453 = vsel %vm448, %v373, 0
        %v456 = vsel %vm448, %v375, 0
        %v459 = vsel %vm448, %v377, 0
        %v462 = vsel %vm448, %v379, 0
        %v465 = vsel %vm448, %v381, 0
        %v468 = vsel %vm448, %v383, 0
        %v471 = vsel %vm448, %v385, 0
        %473 = vmatpush.bf16.msra.mxu0 %v437
        %474 = vmatpush.bf16.msra.mxu0 %v436
        %475 = vmatpush.bf16.msra.mxu0 %v435
        %476 = vmatpush.bf16.msra.mxu0 %v434
        %477 = vmatpush.bf16.msra.mxu0 %v433
        %478 = vmatpush.bf16.msra.mxu0 %v432
        %479 = vmatpush.bf16.msra.mxu0 %v431
        %480 = vmatpush.bf16.msra.mxu0 %v430
        %481 = vmatmul.bf16.gmra.mxu0 %v370
        %v482 = vpop.f32.mrf.mxu0
        %v483 = vadd.f32 %v320, %v482
        %v484 = vpop.f32.mrf.mxu0
        %v485 = vadd.f32 %v320, %v484
        %486 = vmatmul.bf16.gmra.mxu0 %v372
        %v487 = vpop.f32.mrf.mxu0
        %v488 = vadd.f32 %v320, %v487
        %v489 = vpop.f32.mrf.mxu0
        %v490 = vadd.f32 %v320, %v489
        %491 = vmatmul.bf16.gmra.mxu0 %v374
        %v492 = vpop.f32.mrf.mxu0
        %v493 = vadd.f32 %v320, %v492
        %v494 = vpop.f32.mrf.mxu0
        %v495 = vadd.f32 %v320, %v494
        %496 = vmatmul.bf16.gmra.mxu0 %v376
        %v497 = vpop.f32.mrf.mxu0
        %v498 = vadd.f32 %v320, %v497
        %v499 = vpop.f32.mrf.mxu0
        %v500 = vadd.f32 %v320, %v499
        %501 = vmatmul.bf16.gmra.mxu0 %v378
        %v502 = vpop.f32.mrf.mxu0
        %v503 = vadd.f32 %v320, %v502
        %v504 = vpop.f32.mrf.mxu0
        %v505 = vadd.f32 %v320, %v504
        %506 = vmatmul.bf16.gmra.mxu0 %v380
        %v507 = vpop.f32.mrf.mxu0
        %v508 = vadd.f32 %v320, %v507
        %v509 = vpop.f32.mrf.mxu0
        %v510 = vadd.f32 %v320, %v509
        %511 = vmatmul.bf16.gmra.mxu0 %v382
        %v512 = vpop.f32.mrf.mxu0
        %v513 = vadd.f32 %v320, %v512
        %v514 = vpop.f32.mrf.mxu0
        %v515 = vadd.f32 %v320, %v514
        %516 = vmatmul.bf16.gmra.mxu0 %v384
        %v517 = vpop.f32.mrf.mxu0
        %v518 = vadd.f32 %v320, %v517
        %v519 = vpop.f32.mrf.mxu0
        %v520 = vadd.f32 %v320, %v519
        %521 = vdwg.mxu0
        %522 = vmatpush.bf16.msra.mxu0 0
        %523 = vmatpush.bf16.msra.mxu0 0
        %524 = vmatpush.bf16.msra.mxu0 0
        %525 = vmatpush.bf16.msra.mxu0 0
        %526 = vmatpush.bf16.msra.mxu0 0
        %527 = vmatpush.bf16.msra.mxu0 0
        %528 = vmatpush.bf16.msra.mxu0 0
        %529 = vmatpush.bf16.msra.mxu0 %v438
        %530 = vmatmul.bf16.gmra.mxu0 %v450
        %v531 = vpop.f32.mrf.mxu0
        %v532 = vadd.f32 %v483, %v531
        %v533 = vpop.f32.mrf.mxu0
        %v534 = vadd.f32 %v485, %v533
        %535 = vmatmul.bf16.gmra.mxu0 %v453
        %v536 = vpop.f32.mrf.mxu0
        %v537 = vadd.f32 %v488, %v536
        %v538 = vpop.f32.mrf.mxu0
        %v539 = vadd.f32 %v490, %v538
        %540 = vmatmul.bf16.gmra.mxu0 %v456
        %v541 = vpop.f32.mrf.mxu0
        %v542 = vadd.f32 %v493, %v541
        %v543 = vpop.f32.mrf.mxu0
        %v544 = vadd.f32 %v495, %v543
        %545 = vmatmul.bf16.gmra.mxu0 %v459
        %v546 = vpop.f32.mrf.mxu0
        %v547 = vadd.f32 %v498, %v546
        %v548 = vpop.f32.mrf.mxu0
        %v549 = vadd.f32 %v500, %v548
        %550 = vmatmul.bf16.gmra.mxu0 %v462
        %v551 = vpop.f32.mrf.mxu0
        %v552 = vadd.f32 %v503, %v551
        %v553 = vpop.f32.mrf.mxu0
        %v554 = vadd.f32 %v505, %v553
        %555 = vmatmul.bf16.gmra.mxu0 %v465
        %v556 = vpop.f32.mrf.mxu0
        %v557 = vadd.f32 %v508, %v556
        %v558 = vpop.f32.mrf.mxu0
        %v559 = vadd.f32 %v510, %v558
        %560 = vmatmul.bf16.gmra.mxu0 %v468
        %v561 = vpop.f32.mrf.mxu0
        %v562 = vadd.f32 %v513, %v561
        %v563 = vpop.f32.mrf.mxu0
        %v564 = vadd.f32 %v515, %v563
        %565 = vmatmul.bf16.gmra.mxu0 %v471
        %v566 = vpop.f32.mrf.mxu0
        %v567 = vadd.f32 %v518, %v566
        %v568 = vpop.f32.mrf.mxu0
        %v569 = vadd.f32 %v520, %v568
        %570 = vdwg.mxu0
        %v571 = vmax.f32 %v532, 0.0
        %v572 = vmax.f32 %v534, 0.0
        %v573 = vmax.f32 %v537, 0.0
        %v574 = vmax.f32 %v539, 0.0
        %v575 = vmax.f32 %v542, 0.0
        %v576 = vmax.f32 %v544, 0.0
        %v577 = vmax.f32 %v547, 0.0
        %v578 = vmax.f32 %v549, 0.0
        %v579 = vmax.f32 %v552, 0.0
        %v580 = vmax.f32 %v554, 0.0
        %v581 = vmax.f32 %v557, 0.0
        %v582 = vmax.f32 %v559, 0.0
        %v583 = vmax.f32 %v562, 0.0
        %v584 = vmax.f32 %v564, 0.0
        %v585 = vmax.f32 %v567, 0.0
        %v586 = vmax.f32 %v569, 0.0
        %v587 = vld [vmem:[%s3] sm:$0xff]
        %v588 = vld [vmem:[%s3 + $0x8] sm:$0xff]
        %v589 = vld [vmem:[%s3 + $0x10] sm:$0xff]
        %v590 = vld [vmem:[%s3 + $0x18] sm:$0xff]
        %v591 = vld [vmem:[%s4] sm:$0x1]
        %v593 = vperm.slane %v591, 0
        %vm595 = vcmask 261120
        %v597 = vsel %vm595, %v571, 0
        %v600 = vsel %vm595, %v572, 0
        %v603 = vsel %vm595, %v573, 0
        %v606 = vsel %vm595, %v574, 0
        %v609 = vsel %vm595, %v575, 0
        %v612 = vsel %vm595, %v576, 0
        %v615 = vsel %vm595, %v577, 0
        %v618 = vsel %vm595, %v578, 0
        %v621 = vsel %vm595, %v579, 0
        %v624 = vsel %vm595, %v580, 0
        %v627 = vsel %vm595, %v581, 0
        %v630 = vsel %vm595, %v582, 0
        %v633 = vsel %vm595, %v583, 0
        %v636 = vsel %vm595, %v584, 0
        %v639 = vsel %vm595, %v585, 0
        %v642 = vsel %vm595, %v586, 0
        %644 = vmatpush.msra.mxu0 0.0
        %645 = vmatpush.msra.mxu0 0.0
        %646 = vmatpush.msra.mxu0 0.0
        %647 = vmatpush.msra.mxu0 0.0
        %648 = vmatpush.msra.mxu0 0.0
        %649 = vmatpush.msra.mxu0 0.0
        %650 = vmatpush.msra.mxu0 0.0
        %651 = vmatpush.msra.mxu0 0.0
        %652 = vmatpush.msra.mxu0 0.0
        %653 = vmatpush.msra.mxu0 0.0
        %654 = vmatpush.msra.mxu0 0.0
        %655 = vmatpush.msra.mxu0 0.0
        %656 = vmatpush.msra.mxu0 %v590
        %657 = vmatpush.msra.mxu0 %v589
        %658 = vmatpush.msra.mxu0 %v588
        %659 = vmatpush.msra.mxu0 %v587
        %660 = vmatmul.f32.gmra.mxu0 %v597
        %v661 = vpop.f32.mrf.mxu0
        %v662 = vadd.f32 %v593, %v661
        %663 = vmatmul.f32.gmra.mxu0 %v600
        %v664 = vpop.f32.mrf.mxu0
        %v665 = vadd.f32 %v593, %v664
        %666 = vmatmul.f32.gmra.mxu0 %v603
        %v667 = vpop.f32.mrf.mxu0
        %v668 = vadd.f32 %v593, %v667
        %669 = vmatmul.f32.gmra.mxu0 %v606
        %v670 = vpop.f32.mrf.mxu0
        %v671 = vadd.f32 %v593, %v670
        %672 = vmatmul.f32.gmra.mxu0 %v609
        %v673 = vpop.f32.mrf.mxu0
        %v674 = vadd.f32 %v593, %v673
        %675 = vmatmul.f32.gmra.mxu0 %v612
        %v676 = vpop.f32.mrf.mxu0
        %v677 = vadd.f32 %v593, %v676
        %678 = vmatmul.f32.gmra.mxu0 %v615
        %v679 = vpop.f32.mrf.mxu0
        %v680 = vadd.f32 %v593, %v679
        %681 = vmatmul.f32.gmra.mxu0 %v618
        %v682 = vpop.f32.mrf.mxu0
        %v683 = vadd.f32 %v593, %v682
        %684 = vmatmul.f32.gmra.mxu0 %v621
        %v685 = vpop.f32.mrf.mxu0
        %v686 = vadd.f32 %v593, %v685
        %687 = vmatmul.f32.gmra.mxu0 %v624
        %v688 = vpop.f32.mrf.mxu0
        %v689 = vadd.f32 %v593, %v688
        %690 = vmatmul.f32.gmra.mxu0 %v627
        %v691 = vpop.f32.mrf.mxu0
        %v692 = vadd.f32 %v593, %v691
        %693 = vmatmul.f32.gmra.mxu0 %v630
        %v694 = vpop.f32.mrf.mxu0
        %v695 = vadd.f32 %v593, %v694
        %696 = vmatmul.f32.gmra.mxu0 %v633
        %v697 = vpop.f32.mrf.mxu0
        %v698 = vadd.f32 %v593, %v697
        %699 = vmatmul.f32.gmra.mxu0 %v636
        %v700 = vpop.f32.mrf.mxu0
        %v701 = vadd.f32 %v593, %v700
        %702 = vmatmul.f32.gmra.mxu0 %v639
        %v703 = vpop.f32.mrf.mxu0
        %v704 = vadd.f32 %v593, %v703
        %705 = vmatmul.f32.gmra.mxu0 %v642
        %v706 = vpop.f32.mrf.mxu0
        %v707 = vadd.f32 %v593, %v706
        %708 = vdwg.mxu0
        %v709 = vmax.f32 %v662, 0.0
        %v710 = vmax.f32 %v665, 0.0
        %v711 = vmax.f32 %v668, 0.0
        %v712 = vmax.f32 %v671, 0.0
        %v713 = vmax.f32 %v674, 0.0
        %v714 = vmax.f32 %v677, 0.0
        %v715 = vmax.f32 %v680, 0.0
        %v716 = vmax.f32 %v683, 0.0
        %v717 = vmax.f32 %v686, 0.0
        %v718 = vmax.f32 %v689, 0.0
        %v719 = vmax.f32 %v692, 0.0
        %v720 = vmax.f32 %v695, 0.0
        %v721 = vmax.f32 %v698, 0.0
        %v722 = vmax.f32 %v701, 0.0
        %v723 = vmax.f32 %v704, 0.0
        %v724 = vmax.f32 %v707, 0.0
        %v725 = vld [vmem:[%s5] sm:$0x1]
        %v726 = vld [vmem:[#allocation2] sm:$0x1]
        %728 = vset.pattern.permute.xlu0 0
        %729 = vperm.xlu0 %728, %v726
        %v730 = vpop.permute.xlu0 %729
        %v732 = vperm.slane %v730, 0
        %v734 = vsel %vm448, %v725, 0
        %v737 = vsel %vm448, %v709, 0
        %v740 = vsel %vm448, %v710, 0
        %v743 = vsel %vm448, %v711, 0
        %v746 = vsel %vm448, %v712, 0
        %v749 = vsel %vm448, %v713, 0
        %v752 = vsel %vm448, %v714, 0
        %v755 = vsel %vm448, %v715, 0
        %v758 = vsel %vm448, %v716, 0
        %v761 = vsel %vm448, %v717, 0
        %v764 = vsel %vm448, %v718, 0
        %v767 = vsel %vm448, %v719, 0
        %v770 = vsel %vm448, %v720, 0
        %v773 = vsel %vm448, %v721, 0
        %v776 = vsel %vm448, %v722, 0
        %v779 = vsel %vm448, %v723, 0
        %v782 = vsel %vm448, %v724, 0
        %784 = vmatpush.xpose.msra.mxu0 %v782
        %785 = vmatpush.xpose.msra.mxu0 %v779
        %786 = vmatpush.xpose.msra.mxu0 %v776
        %787 = vmatpush.xpose.msra.mxu0 %v773
        %788 = vmatpush.xpose.msra.mxu0 %v770
        %789 = vmatpush.xpose.msra.mxu0 %v767
        %790 = vmatpush.xpose.msra.mxu0 %v764
        %791 = vmatpush.xpose.msra.mxu0 %v761
        %792 = vmatpush.xpose.msra.mxu0 %v758
        %793 = vmatpush.xpose.msra.mxu0 %v755
        %794 = vmatpush.xpose.msra.mxu0 %v752
        %795 = vmatpush.xpose.msra.mxu0 %v749
        %796 = vmatpush.xpose.msra.mxu0 %v746
        %797 = vmatpush.xpose.msra.mxu0 %v743
        %798 = vmatpush.xpose.msra.mxu0 %v740
        %799 = vmatpush.xpose.msra.mxu0 %v737
        %800 = vmatmul.f32.gmra.mxu0 %v734
        %v801 = vpop.f32.mrf.mxu0
        %v802 = vadd.f32 %v732, %v801
        %803 = vdwg.mxu0
        %v804 = vxor.u32 %v802, 2147483648
        %v805 = vmul.f32 %v804, 1.442695
        %v806 = vpow.pop %v805
        %v807 = vadd.f32 %v806, 1.0
        %v808 = vrcp.pop %v807
        %v809 = vmul.f32 %v807, %v808
        %v810 = vsub.f32 1.0, %v809
        %v811 = vmul.f32 %v808, %v810
        %v812 = vadd.f32 %v808, %v811
        %vm813 = vweird.f32 %v807
        %vm814 = vweird.f32 %v808
        %vm815 = vmor %vm813, %vm814
        %v816 = vsel %vm815, %v808, %v812
        %v817 = vand.u32 2147483647, %v807
        %vm818 = vcmp.eq.f32.partialorder %v817, 8.507059e+37
        %v819 = vand.u32 %v807, 2147483648
        %v820 = vor.u32 1.1754944e-38, %v819
        %v821 = vsel %vm818, %v820, %v816
        %v822 = vmul.f32 1.0, %v821
        %823 = vst [vmem:[%s275] sm:$0x1] %v822
        %s824 = sand.u32 %s183, 1
        %s825 = scalar_lea.sflag [#allocation4], %s824
        %s826 = sand.u32 %s183, 1
        %s827 = scalar_lea.vmem [#allocation3], %s826
        // Predicated region
        $region49: #{tpu_custom_call.1} parent=47 // pred_check
          %p828 = pneg %p193
        $region50: #{tpu_custom_call.1} parent=47 // pred_check_branch
          %830 = sbr.rel (%p828) target = $region52
        $region51: #{tpu_custom_call.1} parent=47 // pred_region
          %832 = vsyncadd %s825, 0
          %s833 = scalar_lea.hbm %s7, %s23
          %s835 = sshll.u32 %s827, 4
          %s836 = int_to_ptr.vmem [resolvable:$true] %s835
          %s837 = sshll.u32 %s833, 4
          %s838 = int_to_ptr.hbm [resolvable:$true] %s837
          %840 = dma.vmem_to_hbm [thread:$0]  %s836, 16, %s838, %s825
        $region52: #{tpu_custom_call.1} parent=47 // pred_fallthru
          _
      $region48: #{tpu_custom_call.1} parent=5 // pred_fallthru
        _
      %p841 = scmp.le.s32.totalorder 2, %s18
      // Predicated region
      $region53: #{tpu_custom_call.1} parent=5 // pred_check
        %p842 = pneg %p841
      $region54: #{tpu_custom_call.1} parent=5 // pred_check_branch
        %844 = sbr.rel (%p842) target = $region56
      $region55: #{tpu_custom_call.1} parent=5 // pred_region
        %s845 = ssub.s32 %s18, 2
        // Predicated region
        $region57: #{tpu_custom_call.1} parent=55 // pred_check
          %p846 = pneg %p199
        $region58: #{tpu_custom_call.1} parent=55 // pred_check_branch
          %848 = sbr.rel (%p846) target = $region60
        $region59: #{tpu_custom_call.1} parent=55 // pred_region
          %s849 = sand.u32 %s184, 1
          %s850 = scalar_lea.sflag [#allocation4], %s849
          %s851 = sand.u32 %s184, 1
          %s852 = scalar_lea.vmem [#allocation3], %s851
          %854 = dma.done %s850, 16
        $region60: #{tpu_custom_call.1} parent=55 // pred_fallthru
          _
      $region56: #{tpu_custom_call.1} parent=5 // pred_fallthru
        _
    $region6: #{tpu_custom_call.1} parent=1 // loop_footer
      %s22 = sadd.s32 1, %s18
    $region7: #{tpu_custom_call.1} parent=1 // loop_footer_branch
      %17 = sbr.rel target = $region3
    $region8: #{tpu_custom_call.1} parent=1 // loop_exit
      _
    %855 = vsyncpa [#allocation4], 1
    %s856 = scalar_lea.sflag [#allocation4], 1
    %857 = vsyncpa %s856, 1

</llo_original>
